<compile_context>
chip_gen: v7x
topology: tpu7x:2x2x1
jax: 0.10.0
libtpu: 0.0.40
codegen_flags: <defaults>
</compile_context>

<pallas_src>
import functools

import numpy as np
import jax
import jax.numpy as jnp
from jax import lax
from jax.experimental import pallas as pl
from jax.experimental.pallas import tpu as pltpu


# ----------------------------------------------------------------------------
# Generation-aware VMEM sizing
# ----------------------------------------------------------------------------

def _vmem_capacity_bytes():
    try:
        return int(pltpu.get_tpu_info().vmem_capacity_bytes)
    except Exception:
        return 64 * 1024 * 1024          # conservative (v7x-sized) fallback


_VMEM_CAP = _vmem_capacity_bytes()
_VMEM_LIMIT = int(min(_VMEM_CAP * 3 // 4, 100 * 1024 * 1024))
_ACT_DTYPE = jnp.bfloat16                # intermediate-activation storage dtype


def _cparams(semantics):
    return pltpu.CompilerParams(dimension_semantics=semantics,
                                vmem_limit_bytes=_VMEM_LIMIT)


# ----------------------------------------------------------------------------
# Pallas kernels
# ----------------------------------------------------------------------------

def _conv1x1_kernel(x_ref, ps_ref, pb_ref, w_ref, b_ref, o_ref, *,
                    TH, W, Cin, Cout, has_pre, pre_relu, out_act, lane_dense):
    """Fused (folded-BN + ReLU) -> 1x1 conv -> bias -> activation.  Row-tiled.

    x_ref: (1, TH, W, Cin)    ps/pb: (1, Cin) f32    w_ref: (Cin, Cout) bf16
    b_ref: (1, Cout) f32
    o_ref: (1, TH, W*Cout) when lane_dense (Cout < 128) else (1, TH, W, Cout).
    """
    x = x_ref[0]
    if has_pre:
        x = x.astype(jnp.float32) * ps_ref[0] + pb_ref[0]
    if pre_relu:
        x = jnp.maximum(x, 0.0)
    lhs = x.reshape(TH * W, Cin).astype(jnp.bfloat16)
    out = jnp.dot(lhs, w_ref[...], preferred_element_type=jnp.float32) + b_ref[0]
    if out_act == "relu":
        out = jnp.maximum(out, 0.0)
    elif out_act == "sigmoid":
        out = jax.nn.sigmoid(out)
    if lane_dense:
        o_ref[0] = out.reshape(TH, W * Cout).astype(o_ref.dtype)
    else:
        o_ref[0] = out.reshape(TH, W, Cout).astype(o_ref.dtype)


def _dense_layer_kernel(x_ref, s1_ref, b1_ref, w1_ref, s2_ref, b2_ref, w2_ref,
                        o_ref, midw_ref, acc_ref, *, K, P, H, W, Cin, BC, G):
    """Fused _DenseLayer body + concat:
       BN1 -> ReLU -> 1x1 conv -> BN2 -> ReLU -> KxK conv (stride 1, pad P),
       output = [x, new_features] along channels (concat fused, no HBM round-trip).

    x_ref: (1, H, W, Cin)      s1/b1: (1, Cin) f32   w1_ref: (Cin, BC) bf16
    s2/b2: (1, BC) f32         w2_ref: (K*K*BC, G) bf16, rows in (dy, dx, cin) order
    o_ref: (1, H, W, Cin+G)
    midw_ref: VMEM (H, W+2P, BC) bf16   (W-padded bottleneck; rows need no padding
              because dy shifts are applied as leading-dim slice-adds below)
    acc_ref:  VMEM (H*W, G) f32         (conv accumulator)
    """
    x = x_ref[0]
    xa = jnp.maximum(x.astype(jnp.float32) * s1_ref[0] + b1_ref[0], 0.0)
    mid = jnp.dot(xa.reshape(H * W, Cin).astype(jnp.bfloat16), w1_ref[...],
                  preferred_element_type=jnp.float32)              # (H*W, BC)
    mid = jnp.maximum(mid * s2_ref[0] + b2_ref[0], 0.0)

    if P > 0:
        midw_ref[:, 0:P, :] = jnp.zeros((H, P, BC), jnp.bfloat16)
        midw_ref[:, P + W:, :] = jnp.zeros((H, P, BC), jnp.bfloat16)
    midw_ref[:, P:P + W, :] = mid.reshape(H, W, BC).astype(jnp.bfloat16)

    acc_ref[...] = jnp.zeros((H * W, G), jnp.float32)
    # One column tap (possibly unaligned sublane slice) per dx: K relayouts total,
    # not K*K.  Row (dy) shifts are leading-dim slice-adds at multiples of W.
    for dx in range(K):
        s2d = midw_ref[:, dx:dx + W, :].reshape(H * W, BC)
        for dy in range(K):
            d = dy - P
            a = max(0, -d)
            b = H - max(0, d)
            if b <= a:
                continue
            tap = dy * K + dx
            t = jnp.dot(s2d, w2_ref[tap * BC:(tap + 1) * BC, :],
                        preferred_element_type=jnp.float32)        # (H*W, G)
            acc_ref[a * W:b * W, :] += t[(a + d) * W:(b + d) * W, :]

    # Fused concat([x, new_features], C): pass-through + growth channels.
    o_ref[0, :, :, 0:Cin] = x.astype(o_ref.dtype)
    o_ref[0, :, :, Cin:] = acc_ref[...].reshape(H, W, G).astype(o_ref.dtype)
    # TODO(synk): for very large H (where even the reduced scratch exceeds per-core
    # VMEM) row-tile this kernel with a manual-DMA P-row halo.


def _avgpool_kernel(x_ref, o_ref, xpad_ref, *, K, P, H, W, C):
    """AvgPool2d(kernel=K, stride=1, pad=P), count_include_pad=True, separable."""
    if P > 0:
        xpad_ref[0:P, :, :] = jnp.zeros((P, W + 2 * P, C), jnp.float32)
        xpad_ref[P + H:, :, :] = jnp.zeros((P, W + 2 * P, C), jnp.float32)
        xpad_ref[P:P + H, 0:P, :] = jnp.zeros((H, P, C), jnp.float32)
        xpad_ref[P:P + H, P + W:, :] = jnp.zeros((H, P, C), jnp.float32)
    xpad_ref[P:P + H, P:P + W, :] = x_ref[0].astype(jnp.float32)

    acc_r = xpad_ref[0:H, :, :]
    for dy in range(1, K):
        acc_r = acc_r + xpad_ref[dy:dy + H, :, :]      # row pass (leading dim)
    acc = acc_r[:, 0:W, :]
    for dx in range(1, K):
        acc = acc + acc_r[:, dx:dx + W, :]             # column pass
    o_ref[0] = (acc * (1.0 / (K * K))).astype(o_ref.dtype)


def _up_width_kernel(xT_ref, w_ref, b_ref, aw_ref, o_ref, *,
                     Win, Hin, Cin, Cout, has_conv):
    """Width pass of the separable bilinear upsample, with the comp_up 1x1 conv fused.

    xT_ref: (1, Win, Hin, Cin)   (input pre-transposed H<->W in the wrapper)
    w_ref:  (Cin, Cout) bf16, b_ref: (1, Cout) f32  (dummies when has_conv=False)
    aw_ref: (Wout, Win) bf16
    o_ref:  (1, Wout, Hin*Cout)
    """
    xT = xT_ref[0]
    if has_conv:
        y = jnp.dot(xT.reshape(Win * Hin, Cin).astype(jnp.bfloat16), w_ref[...],
                    preferred_element_type=jnp.float32) + b_ref[0]
        y = y.reshape(Win, Hin * Cout).astype(jnp.bfloat16)
    else:
        y = xT.reshape(Win, Hin * Cout).astype(jnp.bfloat16)
    o_ref[0] = jnp.dot(aw_ref[...], y,
                       preferred_element_type=jnp.float32).astype(o_ref.dtype)


def _up_height_kernel(u_ref, ah_ref, o_ref):
    """Height pass: (Hout, Hin) @ (Hin, Wout*C) -> lane-dense (Hout, Wout*C)."""
    o_ref[0] = jnp.dot(ah_ref[...], u_ref[0].astype(jnp.bfloat16),
                       preferred_element_type=jnp.float32).astype(o_ref.dtype)


# ----------------------------------------------------------------------------
# Wrappers (pallas_call plumbing)
# ----------------------------------------------------------------------------

def _row_tile(H, W, Cin, Cout, in_bytes, out_bytes):
    """Largest valid divisor of H whose double-buffered in+out row tile fits a
    generation-aware budget; prefers >=2 grid steps for pipelining/megacore."""
    budget = min(_VMEM_CAP // 6, 32 * 1024 * 1024)
    per_row = 2 * W * (Cin * in_bytes + Cout * out_bytes)
    cands = [th for th in range(1, H + 1)
             if H % th == 0 and (th % 8 == 0 or th == H)]
    fits = [th for th in cands if th * per_row <= budget]
    if not fits:
        return min(cands)
    multi = [th for th in fits if H // th >= 2]
    return max(multi) if multi else max(fits)


def conv1x1(x, cp, *, pre=None, pre_relu=False, out_act="none",
            out_dtype=_ACT_DTYPE):
    """NHWC 1x1 conv with optional fused folded-BN(+ReLU) in front and act behind."""
    N, H, W, Cin = x.shape
    Cout = cp["w"].shape[-1]
    has_pre = pre is not None
    if has_pre:
        ps, pb = pre["scale"], pre["bias"]
    else:
        ps = jnp.ones((1, Cin), jnp.float32)
        pb = jnp.zeros((1, Cin), jnp.float32)
    TH = _row_tile(H, W, Cin, Cout, x.dtype.itemsize, jnp.dtype(out_dtype).itemsize)
    lane_dense = Cout < 128
    kern = functools.partial(_conv1x1_kernel, TH=TH, W=W, Cin=Cin, Cout=Cout,
                             has_pre=has_pre, pre_relu=pre_relu, out_act=out_act,
                             lane_dense=lane_dense)
    if lane_dense:
        out_shape = jax.ShapeDtypeStruct((N, H, W * Cout), out_dtype)
        out_spec = pl.BlockSpec((1, TH, W * Cout), lambda n, r: (n, r, 0))
    else:
        out_shape = jax.ShapeDtypeStruct((N, H, W, Cout), out_dtype)
        out_spec = pl.BlockSpec((1, TH, W, Cout), lambda n, r: (n, r, 0, 0))
    y = pl.pallas_call(
        kern,
        out_shape=out_shape,
        grid=(N, H // TH),
        in_specs=[
            pl.BlockSpec((1, TH, W, Cin), lambda n, r: (n, r, 0, 0)),
            pl.BlockSpec((1, Cin), lambda n, r: (0, 0)),
            pl.BlockSpec((1, Cin), lambda n, r: (0, 0)),
            pl.BlockSpec((Cin, Cout), lambda n, r: (0, 0)),
            pl.BlockSpec((1, Cout), lambda n, r: (0, 0)),
        ],
        out_specs=out_spec,
        compiler_params=_cparams(("parallel", "parallel")),
    )(x, ps, pb, cp["w"], cp["b"])
    return y.reshape(N, H, W, Cout) if lane_dense else y


def dense_layer_fwd(p, x):
    """Fused BN1+ReLU -> conv1(1x1) -> BN2+ReLU -> conv2(KxK) -> concat([x, new])."""
    N, H, W, Cin = x.shape
    K = p["ks"]
    P = (K - 1) // 2
    BC = p["conv1"]["w"].shape[-1]
    G = p["conv2"]["w"].shape[-1]
    kern = functools.partial(_dense_layer_kernel, K=K, P=P, H=H, W=W,
                             Cin=Cin, BC=BC, G=G)
    return pl.pallas_call(
        kern,
        out_shape=jax.ShapeDtypeStruct((N, H, W, Cin + G), _ACT_DTYPE),
        grid=(N,),
        in_specs=[
            pl.BlockSpec((1, H, W, Cin), lambda n: (n, 0, 0, 0)),
            pl.BlockSpec((1, Cin), lambda n: (0, 0)),
            pl.BlockSpec((1, Cin), lambda n: (0, 0)),
            pl.BlockSpec((Cin, BC), lambda n: (0, 0)),
            pl.BlockSpec((1, BC), lambda n: (0, 0)),
            pl.BlockSpec((1, BC), lambda n: (0, 0)),
            pl.BlockSpec((K * K * BC, G), lambda n: (0, 0)),
        ],
        out_specs=pl.BlockSpec((1, H, W, Cin + G), lambda n: (n, 0, 0, 0)),
        scratch_shapes=[pltpu.VMEM((H, W + 2 * P, BC), jnp.bfloat16),
                        pltpu.VMEM((H * W, G), jnp.float32)],
        compiler_params=_cparams(("parallel",)),
    )(x, p["bn1"]["scale"], p["bn1"]["bias"], p["conv1"]["w"],
      p["bn2"]["scale"], p["bn2"]["bias"], p["conv2"]["w"])


def avg_pool_s1(x, k):
    """AvgPool2d(kernel=k, stride=1, padding=(k-1)//2).  k == 1 is the identity."""
    if k == 1:
        return x
    N, H, W, C = x.shape
    P = (k - 1) // 2
    kern = functools.partial(_avgpool_kernel, K=k, P=P, H=H, W=W, C=C)
    return pl.pallas_call(
        kern,
        out_shape=jax.ShapeDtypeStruct((N, H, W, C), x.dtype),
        grid=(N,),
        in_specs=[pl.BlockSpec((1, H, W, C), lambda n: (n, 0, 0, 0))],
        out_specs=pl.BlockSpec((1, H, W, C), lambda n: (n, 0, 0, 0)),
        scratch_shapes=[pltpu.VMEM((H + 2 * P, W + 2 * P, C), jnp.float32)],
        compiler_params=_cparams(("parallel",)),
    )(x)


def _bilinear_matrix(out_size, in_size):
    """PyTorch nn.Upsample(mode='bilinear', align_corners=False) row weights."""
    ratio = in_size / out_size
    A = np.zeros((out_size, in_size), np.float32)
    for o in range(out_size):
        src = (o + 0.5) * ratio - 0.5
        if src < 0.0:
            src = 0.0
        i0 = min(int(np.floor(src)), in_size - 1)
        i1 = min(i0 + 1, in_size - 1)
        lam = src - i0
        A[o, i0] += 1.0 - lam
        A[o, i1] += lam
    return A


def upsample_bilinear(x, scale, conv=None, out_dtype=_ACT_DTYPE):
    """Separable bilinear upsample (align_corners=False), integer scale factor.

    Width pass (optionally fused with a 1x1 conv) on an H<->W pre-transposed input,
    small JAX transpose of the intermediate, then a height pass producing a
    lane-dense (Hout, Wout*C) output.  No kron(A_w^T, I_C) matrix.
    """
    N, Hin, Win, Cin = x.shape
    Hout, Wout = int(Hin * scale), int(Win * scale)
    Cout = conv["w"].shape[-1] if conv is not None else Cin
    aw = jnp.asarray(_bilinear_matrix(Wout, Win), jnp.bfloat16)   # (Wout, Win)
    ah = jnp.asarray(_bilinear_matrix(Hout, Hin), jnp.bfloat16)   # (Hout, Hin)

    if conv is not None:
        w, b, has_conv = conv["w"], conv["b"], True
    else:
        w = jnp.zeros((1, 1), jnp.bfloat16)
        b = jnp.zeros((1, 1), jnp.float32)
        has_conv = False

    xT = jnp.transpose(x, (0, 2, 1, 3))                            # (N, Win, Hin, Cin)
    kern1 = functools.partial(_up_width_kernel, Win=Win, Hin=Hin,
                              Cin=Cin, Cout=Cout, has_conv=has_conv)
    v = pl.pallas_call(
        kern1,
        out_shape=jax.ShapeDtypeStruct((N, Wout, Hin * Cout), jnp.bfloat16),
        grid=(N,),
        in_specs=[
            pl.BlockSpec((1, Win, Hin, Cin), lambda n: (n, 0, 0, 0)),
            pl.BlockSpec(w.shape, lambda n: (0, 0)),
            pl.BlockSpec(b.shape, lambda n: (0, 0)),
            pl.BlockSpec((Wout, Win), lambda n: (0, 0)),
        ],
        out_specs=pl.BlockSpec((1, Wout, Hin * Cout), lambda n: (n, 0, 0)),
        compiler_params=_cparams(("parallel",)),
    )(xT, w, b, aw)

    # Small XLA transpose of the (N, Wout, Hin, C) intermediate (not of the output).
    u = jnp.transpose(v.reshape(N, Wout, Hin, Cout), (0, 2, 1, 3))
    u = u.reshape(N, Hin, Wout * Cout)

    y = pl.pallas_call(
        _up_height_kernel,
        out_shape=jax.ShapeDtypeStruct((N, Hout, Wout * Cout), out_dtype),
        grid=(N,),
        in_specs=[
            pl.BlockSpec((1, Hin, Wout * Cout), lambda n: (n, 0, 0)),
            pl.BlockSpec((Hout, Hin), lambda n: (0, 0)),
        ],
        out_specs=pl.BlockSpec((1, Hout, Wout * Cout), lambda n: (n, 0, 0)),
        compiler_params=_cparams(("parallel",)),
    )(u, ah)
    return y.reshape(N, Hout, Wout, Cout)


# ----------------------------------------------------------------------------
# Deterministic parameter generation (synthetic — no checkpoint loading)
# ----------------------------------------------------------------------------

class ParamGen:
    def __init__(self, seed):
        self._key = jax.random.PRNGKey(seed)

    def _next(self):
        self._key, k = jax.random.split(self._key)
        return k

    def conv(self, cin, cout, k, bias=True):
        fan_in = cin * k * k
        w = jax.random.normal(self._next(), (k, k, cin, cout), jnp.float32)
        # bf16 weights for the MXU path; accumulation stays f32 in-kernel.
        w = (w * (0.2 / np.sqrt(fan_in))).reshape(k * k * cin, cout).astype(jnp.bfloat16)
        if bias:
            b = 0.01 * jax.random.normal(self._next(), (1, cout), jnp.float32)
        else:
            b = jnp.zeros((1, cout), jnp.float32)
        return {"w": w, "b": b}

    def bn(self, c, eps=1e-5):
        # TODO(synk): BatchNorm is folded to its inference-mode affine form
        # (gamma, beta, running stats); train-mode batch statistics are not computed.
        gamma = 1.0 + 0.05 * jax.random.normal(self._next(), (c,), jnp.float32)
        beta = 0.05 * jax.random.normal(self._next(), (c,), jnp.float32)
        mean = 0.05 * jax.random.normal(self._next(), (c,), jnp.float32)
        var = jnp.abs(1.0 + 0.05 * jax.random.normal(self._next(), (c,), jnp.float32))
        scale = gamma * lax.rsqrt(var + eps)
        bias = beta - mean * scale
        return {"scale": scale.reshape(1, c), "bias": bias.reshape(1, c)}


# ----------------------------------------------------------------------------
# _DenseLayer / _DenseBlock / _MyTransition / build_blocks
# ----------------------------------------------------------------------------

def make_dense_layer(pg, cin, growth, bn_size, ks):
    return {
        "bn1": pg.bn(cin),
        "conv1": pg.conv(cin, bn_size * growth, 1, bias=False),
        "bn2": pg.bn(bn_size * growth),
        "conv2": pg.conv(bn_size * growth, growth, ks, bias=False),
        "ks": ks,
    }


def make_blocks(pg, num_block, num_init_features, pool_ks, ks, bn_size, growth_rate,
                transition_scale):
    num_features = num_init_features
    stages = []
    for num_layers in num_block:
        layers = [make_dense_layer(pg, num_features + i * growth_rate, growth_rate,
                                   bn_size, ks) for i in range(num_layers)]
        num_features += num_layers * growth_rate
        trans = {
            "bn": pg.bn(num_features),
            "conv": pg.conv(num_features, num_features // transition_scale, 1, bias=False),
            "pool_ks": pool_ks,
        }
        num_features //= transition_scale
        stages.append({"layers": layers, "trans": trans})
    return stages, num_features


def run_blocks(stages, x):
    for st in stages:
        for lp in st["layers"]:
            x = dense_layer_fwd(lp, x)          # concat fused in-kernel
        t = st["trans"]
        x = conv1x1(x, t["conv"], pre=t["bn"], pre_relu=True)   # norm->relu->conv
        x = avg_pool_s1(x, t["pool_ks"])                        # stride-1 avg pool
    return x


# ----------------------------------------------------------------------------
# Stand-in for the external pretrained DenseNet backbone (PreTrainedModel)
# ----------------------------------------------------------------------------

def make_backbone(pg):
    # TODO(synk): the pretrained DenseNet-121 backbone is an *external* pretrained
    # module passed into GradientNet.__init__; it is approximated here by a
    # channel/stride-matching stand-in producing features with the exact expected
    # shapes: channels [64, 64, 128, 256, 1024] at strides [2, 4, 8, 16, 32].
    return {
        "conv0_w": 0.05 * jax.random.normal(pg._next(), (7, 7, 3, 64), jnp.float32),
        "norm0": pg.bn(64),
        "s4": {"bn": pg.bn(64), "conv": pg.conv(64, 128, 1, bias=False)},
        "s2": {"bn": pg.bn(128), "conv": pg.conv(128, 256, 1, bias=False)},
        "s1": {"bn": pg.bn(256), "conv": pg.conv(256, 1024, 1, bias=False)},
    }


def backbone_fwd(p, x):
    feats = []
    # net_16M: conv0 (7x7, stride 2, pad 3) + norm0 + relu0  (strided conv: plain-JAX glue)
    h = lax.conv_general_dilated(x, p["conv0_w"], window_strides=(2, 2),
                                 padding=[(3, 3), (3, 3)],
                                 dimension_numbers=("NHWC", "HWIO", "NHWC"))
    h = jnp.maximum(h * p["norm0"]["scale"][0] + p["norm0"]["bias"][0], 0.0)
    feats.append(h)
    # net_8M: pool0 (3x3 max pool, stride 2, pad 1)          (strided pool: plain-JAX glue)
    h = lax.reduce_window(h, -jnp.inf, lax.max, (1, 3, 3, 1), (1, 2, 2, 1),
                          [(0, 0), (1, 1), (1, 1), (0, 0)])
    feats.append(h)
    # net_4M / net_2M / net_1M stand-ins: BN+ReLU -> 1x1 conv (Pallas) -> 2x2 avg pool /2
    for name in ("s4", "s2", "s1"):
        h = conv1x1(h, p[name]["conv"], pre=p[name]["bn"], pre_relu=True)
        h = lax.reduce_window(h, jnp.array(0, h.dtype), lax.add,
                              (1, 2, 2, 1), (1, 2, 2, 1), "VALID") * 0.25
        feats.append(h)
    return feats


# ----------------------------------------------------------------------------
# GradientNet
# ----------------------------------------------------------------------------

class GradientNetPallas:
    def __init__(self, seed=0, bn_size=4, growth_rate=32, transition_scale=2,
                 pretrained_scale=2,
                 block_config=((6, 6, 6), (6, 6, 6), (12, 12, 12), (16, 16, 16), (24, 24, 24)),
                 merge_config=(3, 3, 3)):
        # NOTE: pretrained_scale must be > 1 for the reference forward to be
        # shape-consistent (compress_pretrained_* branch taken), so default is 2.
        pg = ParamGen(seed)
        self.pretrained_scale = pretrained_scale
        self.num_pretrained_features = [64, 64, 128, 256, 1024]
        self.num_input_features = [16, 16, 64, 64, 128]
        self.dense_ks = [7, 5, 3, 3, 3]          # ks per scale (16M,8M,4M,2M,1M)

        self.backbone = make_backbone(pg)
        nif, npf = self.num_input_features, self.num_pretrained_features
        self.compress_pretrained = [pg.conv(npf[i], nif[i], 1) for i in range(5)]

        self.up_for_16 = [pg.conv(nif[c], 16, 1) for c in (1, 2, 3, 4)]
        self.up_for_8 = [pg.conv(nif[c], 16, 1) for c in (2, 3, 4)]
        self.up_for_4 = [pg.conv(nif[c], 64, 1) for c in (3, 4)]
        self.up_for_2 = [pg.conv(nif[4], 256, 1)]
        self.compress16M = pg.conv(nif[0] + 4 * 16, nif[0], 1)
        self.compress8M = pg.conv(nif[1] + 3 * 16, nif[1], 1)
        self.compress4M = pg.conv(nif[2] + 2 * 64, nif[2], 1)
        self.compress2M = pg.conv(nif[3] + 256, nif[3], 1)

        self.denseblocks, self.compress_out = [], []
        for i in range(5):
            stages, out_ch = make_blocks(pg, block_config[i], nif[i], pool_ks=3,
                                         ks=self.dense_ks[i], bn_size=bn_size,
                                         growth_rate=growth_rate,
                                         transition_scale=transition_scale)
            self.denseblocks.append(stages)
            self.compress_out.append(pg.conv(out_ch, 3, 1))

        merge_stages, merge_ch = make_blocks(pg, merge_config, 3 * 5, pool_ks=1, ks=3,
                                             bn_size=bn_size, growth_rate=growth_rate,
                                             transition_scale=transition_scale)
        self.merge_blocks = merge_stages
        self.merge_final = pg.conv(merge_ch, 3, 1)

    def __call__(self, ft_input_nchw):
        x = jnp.transpose(ft_input_nchw, (0, 2, 3, 1)).astype(jnp.float32)  # NCHW->NHWC
        ft_pre = backbone_fwd(self.backbone, x)
        if self.pretrained_scale > 1:
            ft_pre = [conv1x1(ft_pre[i], self.compress_pretrained[i]) for i in range(5)]

        def comp_up(feat, cp, scale):
            # 1x1 conv fused into the upsample width-pass kernel.
            return upsample_bilinear(feat, scale, conv=cp)

        m16 = jnp.concatenate(
            [ft_pre[0],
             comp_up(ft_pre[1], self.up_for_16[0], 2),
             comp_up(ft_pre[2], self.up_for_16[1], 4),
             comp_up(ft_pre[3], self.up_for_16[2], 8),
             comp_up(ft_pre[4], self.up_for_16[3], 16)], axis=-1)
        m16 = conv1x1(m16, self.compress16M)

        m8 = jnp.concatenate(
            [ft_pre[1],
             comp_up(ft_pre[2], self.up_for_8[0], 2),
             comp_up(ft_pre[3], self.up_for_8[1], 4),
             comp_up(ft_pre[4], self.up_for_8[2], 8)], axis=-1)
        m8 = conv1x1(m8, self.compress8M)

        m4 = jnp.concatenate(
            [ft_pre[2],
             comp_up(ft_pre[3], self.up_for_4[0], 2),
             comp_up(ft_pre[4], self.up_for_4[1], 4)], axis=-1)
        m4 = conv1x1(m4, self.compress4M)

        m2 = jnp.concatenate([ft_pre[3], comp_up(ft_pre[4], self.up_for_2[0], 2)], axis=-1)
        m2 = conv1x1(m2, self.compress2M)

        inputs = [m16, m8, m4, m2, ft_pre[4]]
        ft_predict = []
        for i in range(5):
            h = run_blocks(self.denseblocks[i], inputs[i])
            h = conv1x1(h, self.compress_out[i])
            ft_predict.append(h)

        ft_upsampled = [upsample_bilinear(ft_predict[i], 2 ** (i + 1)) for i in range(5)]
        ft_concat = jnp.concatenate(ft_upsampled, axis=-1)
        merged = run_blocks(self.merge_blocks, ft_concat)
        merged = conv1x1(merged, self.merge_final, out_act="sigmoid",
                         out_dtype=jnp.float32)  # fused sigmoid, f32 final head

        outs = ft_predict + [merged]
        # back to NCHW, f32 at the public boundary
        return [jnp.transpose(o, (0, 3, 1, 2)).astype(jnp.float32) for o in outs]


# ----------------------------------------------------------------------------
# Demo
# ----------------------------------------------------------------------------

if __name__ == "__main__":
    # Reduced-depth configuration for a fast smoke run (class defaults reproduce the
    # full PyTorch hyper-parameters: block_config [(6,6,6),...,(24,24,24)], growth 32).
    model = GradientNetPallas(
        seed=0,
        bn_size=2, growth_rate=8, transition_scale=2, pretrained_scale=2,
        block_config=((1,), (1,), (1,), (1,), (1,)),
        merge_config=(1,),
    )

    key = jax.random.PRNGKey(0)
    ft_input = jax.random.normal(key, (1, 3, 64, 64), jnp.float32)   # NCHW, like PyTorch

    outs = model(ft_input)
    outs = [jax.block_until_ready(o) for o in outs]

    # Sanity: 6 outputs; per-scale predictions have 3 channels at strides 2..32,
    # merged output is at full resolution with sigmoid values in [0, 1].
    assert len(outs) == 6
    expected = [(1, 3, 32, 32), (1, 3, 16, 16), (1, 3, 8, 8),
                (1, 3, 4, 4), (1, 3, 2, 2), (1, 3, 64, 64)]
    assert [tuple(o.shape) for o in outs] == expected, [tuple(o.shape) for o in outs]
    assert all(bool(jnp.all(jnp.isfinite(o))) for o in outs)
    assert bool(jnp.all((outs[-1] >= 0.0) & (outs[-1] <= 1.0)))
    print("KERNEL_OK")
</pallas_src>

<mosaic_0001>
module attributes {stable_mosaic.version = 11 : i64} {
  func.func @_conv1x1_kernel(%arg0: i32, %arg1: i32, %arg2: memref<1x8x16x64xf32, #tpu.memory_space<vmem>>, %arg3: memref<1x64xf32, #tpu.memory_space<vmem>>, %arg4: memref<1x64xf32, #tpu.memory_space<vmem>>, %arg5: memref<64x128xbf16, #tpu.memory_space<vmem>>, %arg6: memref<1x128xf32, #tpu.memory_space<vmem>>, %arg7: memref<1x8x16x128xbf16, #tpu.memory_space<vmem>>) attributes {dimension_semantics = [#tpu.dimension_semantics<parallel>, #tpu.dimension_semantics<parallel>], iteration_bounds = array<i64: 1, 2>, scalar_prefetch = 0 : i64, scratch_operands = 0 : i64, tpu.core_type = #tpu.core_type<tc>, window_params = [{transform_indices = @transform_0, window_bounds = array<i64: 1, 8, 16, 64>}, {pipeline_mode = #tpu.pipeline_mode<synchronous>, transform_indices = @transform_1, window_bounds = array<i64: 1, 64>}, {pipeline_mode = #tpu.pipeline_mode<synchronous>, transform_indices = @transform_2, window_bounds = array<i64: 1, 64>}, {pipeline_mode = #tpu.pipeline_mode<synchronous>, transform_indices = @transform_3, window_bounds = array<i64: 64, 128>}, {pipeline_mode = #tpu.pipeline_mode<synchronous>, transform_indices = @transform_4, window_bounds = array<i64: 1, 128>}, {transform_indices = @transform_5, window_bounds = array<i64: 1, 8, 16, 128>}]} {
    %c0 = arith.constant 0 : index
    %c0_0 = arith.constant 0 : index
    %c0_1 = arith.constant 0 : index
    %c0_2 = arith.constant 0 : index
    %0 = vector.load %arg2[%c0, %c0_0, %c0_1, %c0_2] : memref<1x8x16x64xf32, #tpu.memory_space<vmem>>, vector<1x8x16x64xf32>
    %1 = vector.shape_cast %0 : vector<1x8x16x64xf32> to vector<8x16x64xf32>
    %c0_3 = arith.constant 0 : index
    %c0_4 = arith.constant 0 : index
    %2 = vector.load %arg3[%c0_3, %c0_4] : memref<1x64xf32, #tpu.memory_space<vmem>>, vector<1x64xf32>
    %3 = vector.shape_cast %2 : vector<1x64xf32> to vector<64xf32>
    %4 = vector.shape_cast %3 : vector<64xf32> to vector<1x1x64xf32>
    %5 = vector.broadcast %4 : vector<1x1x64xf32> to vector<8x16x64xf32>
    %6 = arith.mulf %1, %5 : vector<8x16x64xf32>
    %c0_5 = arith.constant 0 : index
    %c0_6 = arith.constant 0 : index
    %7 = vector.load %arg4[%c0_5, %c0_6] : memref<1x64xf32, #tpu.memory_space<vmem>>, vector<1x64xf32>
    %8 = vector.shape_cast %7 : vector<1x64xf32> to vector<64xf32>
    %9 = vector.shape_cast %8 : vector<64xf32> to vector<1x1x64xf32>
    %10 = vector.broadcast %9 : vector<1x1x64xf32> to vector<8x16x64xf32>
    %11 = arith.addf %6, %10 : vector<8x16x64xf32>
    %cst = arith.constant 0.000000e+00 : f32
    %12 = vector.broadcast %cst : f32 to vector<8x16x64xf32>
    %13 = arith.maximumf %11, %12 : vector<8x16x64xf32>
    %14 = vector.shape_cast %13 : vector<8x16x64xf32> to vector<128x64xf32>
    %15 = arith.truncf %14 : vector<128x64xf32> to vector<128x64xbf16>
    %c0_7 = arith.constant 0 : index
    %c0_8 = arith.constant 0 : index
    %16 = vector.load %arg5[%c0_7, %c0_8] : memref<64x128xbf16, #tpu.memory_space<vmem>>, vector<64x128xbf16>
    %cst_9 = arith.constant dense<0.000000e+00> : vector<128x128xf32>
    %17 = tpu.matmul %15, %16, %cst_9 {dimension_numbers = #tpu.dot_dimension_numbers<[1], [0], [0], [1], [0, 0, 1, 1], [], []>} : vector<128x64xbf16>, vector<64x128xbf16>, vector<128x128xf32> -> vector<128x128xf32>
    %c0_10 = arith.constant 0 : index
    %c0_11 = arith.constant 0 : index
    %18 = vector.load %arg6[%c0_10, %c0_11] : memref<1x128xf32, #tpu.memory_space<vmem>>, vector<1x128xf32>
    %19 = vector.shape_cast %18 : vector<1x128xf32> to vector<128xf32>
    %20 = vector.shape_cast %19 : vector<128xf32> to vector<1x128xf32>
    %21 = vector.broadcast %20 : vector<1x128xf32> to vector<128x128xf32>
    %22 = arith.addf %17, %21 : vector<128x128xf32>
    %23 = vector.shape_cast %22 : vector<128x128xf32> to vector<8x16x128xf32>
    %24 = arith.truncf %23 : vector<8x16x128xf32> to vector<8x16x128xbf16>
    %c0_12 = arith.constant 0 : index
    %c0_13 = arith.constant 0 : index
    %c0_14 = arith.constant 0 : index
    %c0_15 = arith.constant 0 : index
    %25 = vector.load %arg7[%c0_12, %c0_13, %c0_14, %c0_15] : memref<1x8x16x128xbf16, #tpu.memory_space<vmem>>, vector<1x8x16x128xbf16>
    %26 = vector.shape_cast %25 : vector<1x8x16x128xbf16> to vector<8x16x128xbf16>
    %27 = vector.shape_cast %24 : vector<8x16x128xbf16> to vector<1x8x16x128xbf16>
    tpu.vector_store %arg7[%c0_12, %c0_13, %c0_14, %c0_15], %27 {strides = array<i32>} : memref<1x8x16x128xbf16, #tpu.memory_space<vmem>>, vector<1x8x16x128xbf16>,
    return
  }
  func.func @transform_0(%arg0: i32, %arg1: i32) -> (i32, i32, i32, i32) {
    %c0_i32 = arith.constant 0 : i32
    %c0_i32_0 = arith.constant 0 : i32
    %c0_i32_1 = arith.constant 0 : i32
    return %arg0, %arg1, %c0_i32, %c0_i32_0 : i32, i32, i32, i32
  }
  func.func @transform_1(%arg0: i32, %arg1: i32) -> (i32, i32) {
    %c0_i32 = arith.constant 0 : i32
    %c0_i32_0 = arith.constant 0 : i32
    %c0_i32_1 = arith.constant 0 : i32
    return %c0_i32, %c0_i32_0 : i32, i32
  }
  func.func @transform_2(%arg0: i32, %arg1: i32) -> (i32, i32) {
    %c0_i32 = arith.constant 0 : i32
    %c0_i32_0 = arith.constant 0 : i32
    %c0_i32_1 = arith.constant 0 : i32
    return %c0_i32, %c0_i32_0 : i32, i32
  }
  func.func @transform_3(%arg0: i32, %arg1: i32) -> (i32, i32) {
    %c0_i32 = arith.constant 0 : i32
    %c0_i32_0 = arith.constant 0 : i32
    %c0_i32_1 = arith.constant 0 : i32
    return %c0_i32, %c0_i32_0 : i32, i32
  }
  func.func @transform_4(%arg0: i32, %arg1: i32) -> (i32, i32) {
    %c0_i32 = arith.constant 0 : i32
    %c0_i32_0 = arith.constant 0 : i32
    %c0_i32_1 = arith.constant 0 : i32
    return %c0_i32, %c0_i32_0 : i32, i32
  }
  func.func @transform_5(%arg0: i32, %arg1: i32) -> (i32, i32, i32, i32) {
    %c0_i32 = arith.constant 0 : i32
    %c0_i32_0 = arith.constant 0 : i32
    %c0_i32_1 = arith.constant 0 : i32
    return %arg0, %arg1, %c0_i32, %c0_i32_0 : i32, i32, i32, i32
  }
}

</mosaic_0001>

<llo_original>
// kernel: tpu_custom_call.1
$region0: #{tpu_custom_call.1}
  #allocation0 [shape = 'u32[]', space=smem, size = 0x4, offset = 0x4, fixed_abs, tag = 'smem constant byte address 0x4 - core index']
  #allocation1 [shape = 'u32[144,128]{1,0:T(1,128)}', space=vmem, size = 0x12000, scoped, tag = 'internal scratch']
  %s0 = inlined_call_operand.hbm [shape: f32[1,16,16,64], index: 0, kind: input, shape index: {}]
  %s1 = inlined_call_operand.vmem [shape: f32[1,64], index: 1, kind: input, shape index: {}]
  %s2 = inlined_call_operand.vmem [shape: f32[1,64], index: 2, kind: input, shape index: {}]
  %s3 = inlined_call_operand.hbm [shape: bf16[64,128], index: 3, kind: input, shape index: {}]
  %s4 = inlined_call_operand.vmem [shape: f32[1,128], index: 4, kind: input, shape index: {}]
  %s5 = inlined_call_operand.hbm [shape: bf16[1,16,16,128], index: 5, kind: output, shape index: {}]
  %s6 = sld [smem:[#allocation0]]
  $region61: #{tpu_custom_call.1} parent=0
    _
  %s8 = ssub.s32 1, %s6
  %s9 = scalar_select 0, %s8, %s6
  $region1: #{tpu_custom_call.1} parent=0
    #allocation2 [shape = 'u8[131072]{0}', space=vmem, size = 0x20000, scoped, tag = 'input window, operand 0']
    #allocation3 [shape = 's32[2]{0}', space=sflag, size = 0x8, scoped, tag = 'scoped memory for tpu_custom_call.1']
    #allocation4 [shape = 's32[2]{0}', space=sflag, size = 0x8, scoped, tag = 'scoped memory for tpu_custom_call.1']
    #allocation5 [shape = 'u8[16384]{0}', space=vmem, size = 0x4000, scoped, tag = 'input window, operand 3, single buffered']
    #allocation6 [shape = 's32[1]{0}', space=sflag, size = 0x4, scoped, tag = 'scoped memory for tpu_custom_call.1']
    #allocation7 [shape = 'u8[65536]{0}', space=vmem, size = 0x10000, scoped, tag = 'output window, operand 0']
    %10 = vsyncpa [#allocation3], 0
    %s11 = scalar_lea.sflag [#allocation3], 1
    %12 = vsyncpa %s11, 0
    %13 = vsyncpa [#allocation6], 0
    %14 = vsyncpa [#allocation4], 0
    %s15 = scalar_lea.sflag [#allocation4], 1
    %16 = vsyncpa %s15, 0
    loop: start=0, step=1, limit=4
    $region2: #{tpu_custom_call.1} parent=1 // loop_pre_header
      _
    $region3: #{tpu_custom_call.1} parent=1 // loop_header
      %s18 = sphi 0, %s22
      %p19 = scmp.ge.s32.totalorder %s18, 4
      %s25 = sphi 0, %s37
      %s26 = sphi 0, %s33
      %s27 = sphi 0, %s25
      %s28 = sphi 0, %s26
      %s29 = sphi 0, %s27
      %s30 = sphi 0, %s28
      %s42 = sphi 0, %s44
      %s45 = sphi 0, %s42
      %s46 = sphi 0, %s45
      %s62 = sphi 0, %s46
      %s66 = sphi 0, %s66
      %s68 = sphi 0, %s66
      %s69 = sphi 0, %s68
      %s83 = sphi 0, %s69
      %s87 = sphi 0, %s87
      %s89 = sphi 0, %s87
      %s90 = sphi 0, %s89
      %s104 = sphi 0, %s90
      %s108 = sphi 0, %s108
      %s110 = sphi 0, %s108
      %s111 = sphi 0, %s110
      %s125 = sphi 0, %s111
      %s129 = sphi 0, %s129
      %s131 = sphi 0, %s129
      %s132 = sphi 0, %s131
      %s146 = sphi 0, %s132
      %s154 = sphi 0, %s156
      %s157 = sphi 0, %s154
      %s158 = sphi 0, %s157
      %s174 = sphi 0, %s158
    $region4: #{tpu_custom_call.1} parent=1 // loop_header_branch
      %21 = sbr.rel (%p19) target = $region8
    $region5: #{tpu_custom_call.1} parent=1 // loop_body
      %s23 = ssub.s32 %s18, 1
      %s24 = ssub.s32 %s18, 2
      %s31 = sadd.s32 1, %s26
      %p32 = scmp.ge.s32.totalorder %s31, 2
      %s33 = scalar_select %p32, 0, %s31
      %s34 = sadd.s32 1, %s25
      %s35 = scalar_select %p32, %s34, %s25
      %p36 = scmp.ge.s32.totalorder %s35, 1
      %s37 = scalar_select %p36, 0, %s35
      %s38 = ssub.s32 %s25, %s37
      %s39 = ssub.s32 %s26, %s33
      %s40 = sor.u32 %s38, %s39
      %p41 = scmp.eq.s32.totalorder %s40, 0
      %s43 = sadd.s32 %s42, 1
      %s44 = scalar_select %p41, %s42, %s43
      %p47 = pneg %p41
      %p48 = scmp.eq.s32.totalorder %s18, 1
      %p49 = por %p47, %p48
      %p50 = scmp.ne.s32.totalorder %s42, %s45
      %p51 = scmp.eq.s32.totalorder %s18, 0
      %p52 = por %p50, %p51
      %p53 = scmp.ne.s32.totalorder %s42, %s45
      %p54 = scmp.eq.s32.totalorder %s23, 1
      %p55 = por %p53, %p54
      %p56 = scmp.ne.s32.totalorder %s45, %s46
      %p57 = scmp.eq.s32.totalorder %s23, 0
      %p58 = por %p56, %p57
      %p59 = scmp.ne.s32.totalorder %s45, %s46
      %p60 = scmp.eq.s32.totalorder %s24, 1
      %p61 = por %p59, %p60
      %p63 = scmp.ne.s32.totalorder %s46, %s62
      %p64 = scmp.eq.s32.totalorder %s24, 0
      %p65 = por %p63, %p64
      %s67 = sadd.s32 %s66, 1
      %p70 = scmp.eq.s32.totalorder %s18, 1
      %p71 = scmp.ne.s32.totalorder %s66, %s68
      %p72 = scmp.eq.s32.totalorder %s18, 0
      %p73 = por %p71, %p72
      %p74 = scmp.ne.s32.totalorder %s66, %s68
      %p75 = scmp.eq.s32.totalorder %s23, 1
      %p76 = por %p74, %p75
      %p77 = scmp.ne.s32.totalorder %s68, %s69
      %p78 = scmp.eq.s32.totalorder %s23, 0
      %p79 = por %p77, %p78
      %p80 = scmp.ne.s32.totalorder %s68, %s69
      %p81 = scmp.eq.s32.totalorder %s24, 1
      %p82 = por %p80, %p81
      %p84 = scmp.ne.s32.totalorder %s69, %s83
      %p85 = scmp.eq.s32.totalorder %s24, 0
      %p86 = por %p84, %p85
      %s88 = sadd.s32 %s87, 1
      %p91 = scmp.eq.s32.totalorder %s18, 1
      %p92 = scmp.ne.s32.totalorder %s87, %s89
      %p93 = scmp.eq.s32.totalorder %s18, 0
      %p94 = por %p92, %p93
      %p95 = scmp.ne.s32.totalorder %s87, %s89
      %p96 = scmp.eq.s32.totalorder %s23, 1
      %p97 = por %p95, %p96
      %p98 = scmp.ne.s32.totalorder %s89, %s90
      %p99 = scmp.eq.s32.totalorder %s23, 0
      %p100 = por %p98, %p99
      %p101 = scmp.ne.s32.totalorder %s89, %s90
      %p102 = scmp.eq.s32.totalorder %s24, 1
      %p103 = por %p101, %p102
      %p105 = scmp.ne.s32.totalorder %s90, %s104
      %p106 = scmp.eq.s32.totalorder %s24, 0
      %p107 = por %p105, %p106
      %s109 = sadd.s32 %s108, 1
      %p112 = scmp.eq.s32.totalorder %s18, 1
      %p113 = scmp.ne.s32.totalorder %s108, %s110
      %p114 = scmp.eq.s32.totalorder %s18, 0
      %p115 = por %p113, %p114
      %p116 = scmp.ne.s32.totalorder %s108, %s110
      %p117 = scmp.eq.s32.totalorder %s23, 1
      %p118 = por %p116, %p117
      %p119 = scmp.ne.s32.totalorder %s110, %s111
      %p120 = scmp.eq.s32.totalorder %s23, 0
      %p121 = por %p119, %p120
      %p122 = scmp.ne.s32.totalorder %s110, %s111
      %p123 = scmp.eq.s32.totalorder %s24, 1
      %p124 = por %p122, %p123
      %p126 = scmp.ne.s32.totalorder %s111, %s125
      %p127 = scmp.eq.s32.totalorder %s24, 0
      %p128 = por %p126, %p127
      %s130 = sadd.s32 %s129, 1
      %p133 = scmp.eq.s32.totalorder %s18, 1
      %p134 = scmp.ne.s32.totalorder %s129, %s131
      %p135 = scmp.eq.s32.totalorder %s18, 0
      %p136 = por %p134, %p135
      %p137 = scmp.ne.s32.totalorder %s129, %s131
      %p138 = scmp.eq.s32.totalorder %s23, 1
      %p139 = por %p137, %p138
      %p140 = scmp.ne.s32.totalorder %s131, %s132
      %p141 = scmp.eq.s32.totalorder %s23, 0
      %p142 = por %p140, %p141
      %p143 = scmp.ne.s32.totalorder %s131, %s132
      %p144 = scmp.eq.s32.totalorder %s24, 1
      %p145 = por %p143, %p144
      %p147 = scmp.ne.s32.totalorder %s132, %s146
      %p148 = scmp.eq.s32.totalorder %s24, 0
      %p149 = por %p147, %p148
      %s150 = ssub.s32 %s25, %s37
      %s151 = ssub.s32 %s26, %s33
      %s152 = sor.u32 %s150, %s151
      %p153 = scmp.eq.s32.totalorder %s152, 0
      %s155 = sadd.s32 %s154, 1
      %s156 = scalar_select %p153, %s154, %s155
      %p159 = pneg %p153
      %p160 = scmp.eq.s32.totalorder %s18, 1
      %p161 = por %p159, %p160
      %p162 = scmp.ne.s32.totalorder %s154, %s157
      %p163 = scmp.eq.s32.totalorder %s18, 0
      %p164 = por %p162, %p163
      %p165 = scmp.ne.s32.totalorder %s154, %s157
      %p166 = scmp.eq.s32.totalorder %s23, 1
      %p167 = por %p165, %p166
      %p168 = scmp.ne.s32.totalorder %s157, %s158
      %p169 = scmp.eq.s32.totalorder %s23, 0
      %p170 = por %p168, %p169
      %p171 = scmp.ne.s32.totalorder %s157, %s158
      %p172 = scmp.eq.s32.totalorder %s24, 1
      %p173 = por %p171, %p172
      %p175 = scmp.ne.s32.totalorder %s158, %s174
      %p176 = scmp.eq.s32.totalorder %s24, 0
      %p177 = por %p175, %p176
      %p178 = scmp.le.s32.totalorder 1, %s18
      %p179 = scmp.lt.s32.totalorder %s18, 3
      %p180 = pnand %p178, %p179
      %p181 = pneg %p180
      // Predicated region
      $region9: #{tpu_custom_call.1} parent=5 // pred_check
        _
      $region10: #{tpu_custom_call.1} parent=5 // pred_check_branch
        %183 = sbr.rel (%p180) target = $region12
      $region11: #{tpu_custom_call.1} parent=5 // pred_region
        %s184 = ssub.s32 %s18, 1
        // Predicated region
        $region13: #{tpu_custom_call.1} parent=11 // pred_check
          %p185 = pneg %p79
        $region14: #{tpu_custom_call.1} parent=11 // pred_check_branch
          %187 = sbr.rel (%p185) target = $region16
        $region15: #{tpu_custom_call.1} parent=11 // pred_region
          _
        $region16: #{tpu_custom_call.1} parent=11 // pred_fallthru
          _
        // Predicated region
        $region17: #{tpu_custom_call.1} parent=11 // pred_check
          %p188 = pneg %p100
        $region18: #{tpu_custom_call.1} parent=11 // pred_check_branch
          %190 = sbr.rel (%p188) target = $region20
        $region19: #{tpu_custom_call.1} parent=11 // pred_region
          _
        $region20: #{tpu_custom_call.1} parent=11 // pred_fallthru
          _
        // Predicated region
        $region21: #{tpu_custom_call.1} parent=11 // pred_check
          %p191 = pneg %p121
        $region22: #{tpu_custom_call.1} parent=11 // pred_check_branch
          %193 = sbr.rel (%p191) target = $region24
        $region23: #{tpu_custom_call.1} parent=11 // pred_region
          %s195 = ssub.s32 512, 512
          %196 = vsyncadd [#allocation6], %s195
          %s197 = sshll.u32 [#allocation5], 4
          %s198 = int_to_ptr.vmem [resolvable:$true] %s197
          %203 = dma.hbm_to_vmem [thread:$0]  %s3, 512, %s198, [#allocation6], 64, 64, 4
        $region24: #{tpu_custom_call.1} parent=11 // pred_fallthru
          _
        // Predicated region
        $region25: #{tpu_custom_call.1} parent=11 // pred_check
          %p204 = pneg %p142
        $region26: #{tpu_custom_call.1} parent=11 // pred_check_branch
          %206 = sbr.rel (%p204) target = $region28
        $region27: #{tpu_custom_call.1} parent=11 // pred_region
          _
        $region28: #{tpu_custom_call.1} parent=11 // pred_fallthru
          _
      $region12: #{tpu_custom_call.1} parent=5 // pred_fallthru
        _
      %p207 = scmp.lt.s32.totalorder %s18, 2
      // Predicated region
      $region29: #{tpu_custom_call.1} parent=5 // pred_check
        %p208 = pneg %p207
      $region30: #{tpu_custom_call.1} parent=5 // pred_check_branch
        %210 = sbr.rel (%p208) target = $region32
      $region31: #{tpu_custom_call.1} parent=5 // pred_region
        // Predicated region
        $region33: #{tpu_custom_call.1} parent=31 // pred_check
          %p211 = pneg %p52
        $region34: #{tpu_custom_call.1} parent=31 // pred_check_branch
          %213 = sbr.rel (%p211) target = $region36
        $region35: #{tpu_custom_call.1} parent=31 // pred_region
          %s214 = sand.u32 %s42, 1
          %s215 = scalar_lea.sflag [#allocation3], %s214
          %s216 = sand.u32 %s42, 1
          %s217 = smul.addr %s216, 128
          %s218 = scalar_lea.vmem [#allocation2], %s217
          %s219 = smul.u32 8, %s26
          %s221 = ssub.s32 2048, 2048
          %222 = vsyncadd %s215, %s221
          %s223 = smul.addr %s219, 2
          %s224 = smul.addr %s25, 32
          %s225 = sadd.s32 %s223, %s224
          %s226 = smul.addr %s225, 128
          %s227 = scalar_lea.hbm %s0, %s226
          %s228 = sshll.u32 %s218, 4
          %s229 = int_to_ptr.vmem [resolvable:$true] %s228
          %234 = dma.hbm_to_vmem [thread:$0]  %s227, 2048, %s229, %s215, 128, 128, 8
        $region36: #{tpu_custom_call.1} parent=31 // pred_fallthru
          _
      $region32: #{tpu_custom_call.1} parent=5 // pred_fallthru
        _
      %p235 = scmp.le.s32.totalorder 1, %s18
      %p236 = scmp.lt.s32.totalorder %s18, 3
      %p237 = pnand %p235, %p236
      %p238 = pneg %p237
      // Predicated region
      $region37: #{tpu_custom_call.1} parent=5 // pred_check
        _
      $region38: #{tpu_custom_call.1} parent=5 // pred_check_branch
        %240 = sbr.rel (%p237) target = $region40
      $region39: #{tpu_custom_call.1} parent=5 // pred_region
        %s241 = ssub.s32 %s18, 1
        %s242 = sand.u32 %s45, 1
        %s243 = scalar_lea.sflag [#allocation3], %s242
        %s244 = sand.u32 %s45, 1
        %s245 = smul.addr %s244, 128
        %s246 = scalar_lea.vmem [#allocation2], %s245
        // Predicated region
        $region41: #{tpu_custom_call.1} parent=39 // pred_check
          %p247 = pneg %p58
        $region42: #{tpu_custom_call.1} parent=39 // pred_check_branch
          %249 = sbr.rel (%p247) target = $region44
        $region43: #{tpu_custom_call.1} parent=39 // pred_region
          %250 = dma.done %s243, 2048
        $region44: #{tpu_custom_call.1} parent=39 // pred_fallthru
          _
        // Predicated region
        $region45: #{tpu_custom_call.1} parent=39 // pred_check
          %p251 = pneg %p121
        $region46: #{tpu_custom_call.1} parent=39 // pred_check_branch
          %253 = sbr.rel (%p251) target = $region48
        $region47: #{tpu_custom_call.1} parent=39 // pred_region
          %254 = dma.done [#allocation6], 512
        $region48: #{tpu_custom_call.1} parent=39 // pred_fallthru
          _
        %s255 = sand.u32 %s45, 1
        %s256 = scalar_lea.sflag [#allocation3], %s255
        %s257 = sand.u32 %s45, 1
        %s258 = smul.addr %s257, 128
        %s259 = scalar_lea.vmem [#allocation2], %s258
        %p260 = pneg %p58
        %p261 = pneg %p55
        %p262 = pneg %p79
        %p263 = pneg %p76
        %p264 = pneg %p100
        %p265 = pneg %p97
        %p266 = pneg %p121
        %p267 = pneg %p118
        %p268 = pneg %p142
        %p269 = pneg %p139
        %p270 = pneg %p170
        %p271 = pneg %p167
        %s272 = sand.u32 %s157, 1
        %s273 = scalar_lea.sflag [#allocation4], %s272
        %s274 = sand.u32 %s157, 1
        %s275 = smul.addr %s274, 64
        %s276 = scalar_lea.vmem [#allocation7], %s275
        %s277 = smul.u32 8, %s28
        %s278 = smul.u32 8, %s28
        %v280 = vld [vmem:[%s246] sm:$0xff]
        %v281 = vld [vmem:[%s246 + $0x8] sm:$0xff]
        %v282 = vld [vmem:[%s246 + $0x10] sm:$0xff]
        %v283 = vld [vmem:[%s246 + $0x18] sm:$0xff]
        %v284 = vld [vmem:[%s246 + $0x20] sm:$0xff]
        %v285 = vld [vmem:[%s246 + $0x28] sm:$0xff]
        %v286 = vld [vmem:[%s246 + $0x30] sm:$0xff]
        %v287 = vld [vmem:[%s246 + $0x38] sm:$0xff]
        %v288 = vld [vmem:[%s246 + $0x40] sm:$0xff]
        %v289 = vld [vmem:[%s246 + $0x48] sm:$0xff]
        %v290 = vld [vmem:[%s246 + $0x50] sm:$0xff]
        %v291 = vld [vmem:[%s246 + $0x58] sm:$0xff]
        %v292 = vld [vmem:[%s246 + $0x60] sm:$0xff]
        %v293 = vld [vmem:[%s246 + $0x68] sm:$0xff]
        %v294 = vld [vmem:[%s246 + $0x70] sm:$0xff]
        %v295 = vld [vmem:[%s246 + $0x78] sm:$0xff]
        %v296 = vld [vmem:[%s1] sm:$0x1]
        %v298 = vlaneseq
        %v299 = vshrl.u32 %v298, 7
        %v300 = vsub.s32 0, %v299
        %v301 = vrot.slane %v296, %v300
        %v303 = vmul.f32 %v280, %v301
        %v304 = vmul.f32 %v281, %v301
        %v305 = vmul.f32 %v282, %v301
        %v306 = vmul.f32 %v283, %v301
        %v307 = vmul.f32 %v284, %v301
        %v308 = vmul.f32 %v285, %v301
        %v309 = vmul.f32 %v286, %v301
        %v310 = vmul.f32 %v287, %v301
        %v311 = vmul.f32 %v288, %v301
        %v312 = vmul.f32 %v289, %v301
        %v313 = vmul.f32 %v290, %v301
        %v314 = vmul.f32 %v291, %v301
        %v315 = vmul.f32 %v292, %v301
        %v316 = vmul.f32 %v293, %v301
        %v317 = vmul.f32 %v294, %v301
        %v318 = vmul.f32 %v295, %v301
        %v319 = vld [vmem:[%s2] sm:$0x1]
        %v321 = vlaneseq
        %v322 = vshrl.u32 %v321, 7
        %v323 = vsub.s32 0, %v322
        %v324 = vrot.slane %v319, %v323
        %v326 = vadd.f32 %v303, %v324
        %v327 = vadd.f32 %v304, %v324
        %v328 = vadd.f32 %v305, %v324
        %v329 = vadd.f32 %v306, %v324
        %v330 = vadd.f32 %v307, %v324
        %v331 = vadd.f32 %v308, %v324
        %v332 = vadd.f32 %v309, %v324
        %v333 = vadd.f32 %v310, %v324
        %v334 = vadd.f32 %v311, %v324
        %v335 = vadd.f32 %v312, %v324
        %v336 = vadd.f32 %v313, %v324
        %v337 = vadd.f32 %v314, %v324
        %v338 = vadd.f32 %v315, %v324
        %v339 = vadd.f32 %v316, %v324
        %v340 = vadd.f32 %v317, %v324
        %v341 = vadd.f32 %v318, %v324
        %v342 = vmax.f32 %v326, 0.0
        %v343 = vmax.f32 %v327, 0.0
        %v344 = vmax.f32 %v328, 0.0
        %v345 = vmax.f32 %v329, 0.0
        %v346 = vmax.f32 %v330, 0.0
        %v347 = vmax.f32 %v331, 0.0
        %v348 = vmax.f32 %v332, 0.0
        %v349 = vmax.f32 %v333, 0.0
        %v350 = vmax.f32 %v334, 0.0
        %v351 = vmax.f32 %v335, 0.0
        %v352 = vmax.f32 %v336, 0.0
        %v353 = vmax.f32 %v337, 0.0
        %v354 = vmax.f32 %v338, 0.0
        %v355 = vmax.f32 %v339, 0.0
        %v356 = vmax.f32 %v340, 0.0
        %v357 = vmax.f32 %v341, 0.0
        %v358 = vpack.c.bf16 %v343, %v342
        %v359 = vpack.c.bf16 %v345, %v344
        %v360 = vpack.c.bf16 %v347, %v346
        %v361 = vpack.c.bf16 %v349, %v348
        %v362 = vpack.c.bf16 %v351, %v350
        %v363 = vpack.c.bf16 %v353, %v352
        %v364 = vpack.c.bf16 %v355, %v354
        %v365 = vpack.c.bf16 %v357, %v356
        %v366 = vld [vmem:[#allocation5] sm:$0xf]
        %v367 = vld [vmem:[#allocation5 + $0x4] sm:$0xf]
        %v368 = vld [vmem:[#allocation5 + $0x8] sm:$0xf]
        %v369 = vld [vmem:[#allocation5 + $0xc] sm:$0xf]
        %v370 = vld [vmem:[#allocation5 + $0x10] sm:$0xf]
        %v371 = vld [vmem:[#allocation5 + $0x14] sm:$0xf]
        %v372 = vld [vmem:[#allocation5 + $0x18] sm:$0xf]
        %v373 = vld [vmem:[#allocation5 + $0x1c] sm:$0xf]
        %v374 = vld [vmem:[%s4] sm:$0x1]
        %v376 = vlaneseq
        %v377 = vshrl.u32 %v376, 7
        %v378 = vsub.s32 0, %v377
        %v379 = vrot.slane %v374, %v378
        %v389 = vunpack.c.l.b16 %v366
        %v390 = vunpack.c.l.b16 %v367
        %v391 = vunpack.c.l.b16 %v368
        %v392 = vunpack.c.l.b16 %v369
        %v393 = vunpack.c.l.b16 %v370
        %v394 = vunpack.c.l.b16 %v371
        %v395 = vunpack.c.l.b16 %v372
        %v396 = vunpack.c.l.b16 %v373
        %v397 = vpack.c.b16 %v390, %v389
        %v398 = vpack.c.b16 %v392, %v391
        %v399 = vpack.c.b16 %v394, %v393
        %v400 = vpack.c.b16 %v396, %v395
        %vm405 = vcmask 523264
        %v407 = vsel %vm405, %v358, 0
        %v410 = vsel %vm405, %v359, 0
        %v413 = vsel %vm405, %v360, 0
        %v416 = vsel %vm405, %v361, 0
        %v419 = vsel %vm405, %v362, 0
        %v422 = vsel %vm405, %v363, 0
        %v425 = vsel %vm405, %v364, 0
        %v428 = vsel %vm405, %v365, 0
        %430 = vmatprep.subr.bf16.mxu0 0
        %431 = vmatpush1.bf16.msra.mxu0 %v397
        %432 = vmatprep.subr.bf16.mxu0 0
        %433 = vmatpush1.bf16.msra.mxu0 %v398
        %434 = vmatprep.subr.bf16.mxu0 0
        %435 = vmatpush1.bf16.msra.mxu0 %v399
        %436 = vmatprep.subr.bf16.mxu0 0
        %437 = vmatpush1.bf16.msra.mxu0 %v400
        %438 = vmatprep.subr.bf16.mxu0 0
        %439 = vmatpush1.bf16.msra.mxu0 0
        %440 = vmatprep.subr.bf16.mxu0 0
        %441 = vmatpush1.bf16.msra.mxu0 0
        %442 = vmatprep.subr.bf16.mxu0 0
        %443 = vmatpush1.bf16.msra.mxu0 0
        %444 = vmatprep.subr.bf16.mxu0 0
        %445 = vmatpush1.bf16.msra.mxu0 0
        %446 = vmatprep.subr.bf16.mxu0 0
        %447 = vmatpush1.bf16.msra.mxu0 0
        %448 = vmatprep.subr.bf16.mxu0 0
        %449 = vmatpush1.bf16.msra.mxu0 0
        %450 = vmatprep.subr.bf16.mxu0 0
        %451 = vmatpush1.bf16.msra.mxu0 0
        %452 = vmatprep.subr.bf16.mxu0 0
        %453 = vmatpush1.bf16.msra.mxu0 0
        %454 = vmatprep.subr.bf16.mxu0 0
        %455 = vmatpush1.bf16.msra.mxu0 0
        %456 = vmatprep.subr.bf16.mxu0 0
        %457 = vmatpush1.bf16.msra.mxu0 0
        %458 = vmatprep.subr.bf16.mxu0 0
        %459 = vmatpush1.bf16.msra.mxu0 0
        %460 = vmatprep.subr.bf16.mxu0 0
        %461 = vmatpush1.bf16.msra.mxu0 0
        %462 = vmatprep.mubr.bf16.mxu0 0
        %463 = vmatmul.mubr.bf16.gmra.mrb[0].mxu0 %v407
        %v464 = vpop.f32.mrb[0].mxu0
        %v465 = vadd.f32 %v379, %v464
        %v466 = vpop.f32.mrb[0].mxu0
        %v467 = vpop.f32.mrb[0].mxu0
        %v468 = vadd.f32 %v379, %v467
        %v469 = vpop.f32.mrb[0].mxu0
        %470 = vmatprep.mubr.bf16.mxu0 0
        %471 = vmatmul.mubr.bf16.gmra.mrb[0].mxu0 %v410
        %v472 = vpop.f32.mrb[0].mxu0
        %v473 = vadd.f32 %v379, %v472
        %v474 = vpop.f32.mrb[0].mxu0
        %v475 = vpop.f32.mrb[0].mxu0
        %v476 = vadd.f32 %v379, %v475
        %v477 = vpop.f32.mrb[0].mxu0
        %478 = vmatprep.mubr.bf16.mxu0 0
        %479 = vmatmul.mubr.bf16.gmra.mrb[0].mxu0 %v413
        %v480 = vpop.f32.mrb[0].mxu0
        %v481 = vadd.f32 %v379, %v480
        %v482 = vpop.f32.mrb[0].mxu0
        %v483 = vpop.f32.mrb[0].mxu0
        %v484 = vadd.f32 %v379, %v483
        %v485 = vpop.f32.mrb[0].mxu0
        %486 = vmatprep.mubr.bf16.mxu0 0
        %487 = vmatmul.mubr.bf16.gmra.mrb[0].mxu0 %v416
        %v488 = vpop.f32.mrb[0].mxu0
        %v489 = vadd.f32 %v379, %v488
        %v490 = vpop.f32.mrb[0].mxu0
        %v491 = vpop.f32.mrb[0].mxu0
        %v492 = vadd.f32 %v379, %v491
        %v493 = vpop.f32.mrb[0].mxu0
        %494 = vmatprep.mubr.bf16.mxu0 0
        %495 = vmatmul.mubr.bf16.gmra.mrb[0].mxu0 %v419
        %v496 = vpop.f32.mrb[0].mxu0
        %v497 = vadd.f32 %v379, %v496
        %v498 = vpop.f32.mrb[0].mxu0
        %v499 = vpop.f32.mrb[0].mxu0
        %v500 = vadd.f32 %v379, %v499
        %v501 = vpop.f32.mrb[0].mxu0
        %502 = vmatprep.mubr.bf16.mxu0 0
        %503 = vmatmul.mubr.bf16.gmra.mrb[0].mxu0 %v422
        %v504 = vpop.f32.mrb[0].mxu0
        %v505 = vadd.f32 %v379, %v504
        %v506 = vpop.f32.mrb[0].mxu0
        %v507 = vpop.f32.mrb[0].mxu0
        %v508 = vadd.f32 %v379, %v507
        %v509 = vpop.f32.mrb[0].mxu0
        %510 = vmatprep.mubr.bf16.mxu0 0
        %511 = vmatmul.mubr.bf16.gmra.mrb[0].mxu0 %v425
        %v512 = vpop.f32.mrb[0].mxu0
        %v513 = vadd.f32 %v379, %v512
        %v514 = vpop.f32.mrb[0].mxu0
        %v515 = vpop.f32.mrb[0].mxu0
        %v516 = vadd.f32 %v379, %v515
        %v517 = vpop.f32.mrb[0].mxu0
        %518 = vmatprep.mubr.bf16.mxu0 0
        %519 = vmatmul.mubr.bf16.gmra.mrb[0].mxu0 %v428
        %v520 = vpop.f32.mrb[0].mxu0
        %v521 = vadd.f32 %v379, %v520
        %v522 = vpop.f32.mrb[0].mxu0
        %v523 = vpop.f32.mrb[0].mxu0
        %v524 = vadd.f32 %v379, %v523
        %v525 = vpop.f32.mrb[0].mxu0
        %526 = vdwg.mxu0
        %v527 = vpack.c.bf16 %v468, %v465
        %v528 = vpack.c.bf16 %v476, %v473
        %v529 = vpack.c.bf16 %v484, %v481
        %v530 = vpack.c.bf16 %v492, %v489
        %v531 = vpack.c.bf16 %v500, %v497
        %v532 = vpack.c.bf16 %v508, %v505
        %v533 = vpack.c.bf16 %v516, %v513
        %v534 = vpack.c.bf16 %v524, %v521
        %v543 = vunpack.c.l.b16 %v527
        %v544 = vunpack.c.h.b16 %v527
        %v545 = vunpack.c.l.b16 %v528
        %v546 = vunpack.c.h.b16 %v528
        %v547 = vunpack.c.l.b16 %v529
        %v548 = vunpack.c.h.b16 %v529
        %v549 = vunpack.c.l.b16 %v530
        %v550 = vunpack.c.h.b16 %v530
        %v551 = vunpack.c.l.b16 %v531
        %v552 = vunpack.c.h.b16 %v531
        %v553 = vunpack.c.l.b16 %v532
        %v554 = vunpack.c.h.b16 %v532
        %v555 = vunpack.c.l.b16 %v533
        %v556 = vunpack.c.h.b16 %v533
        %v557 = vunpack.c.l.b16 %v534
        %v558 = vunpack.c.h.b16 %v534
        %v559 = vpack.c.b16 %v543, %v543
        %v560 = vpack.c.b16 %v544, %v544
        %v561 = vpack.c.b16 %v545, %v545
        %v562 = vpack.c.b16 %v546, %v546
        %v563 = vpack.c.b16 %v547, %v547
        %v564 = vpack.c.b16 %v548, %v548
        %v565 = vpack.c.b16 %v549, %v549
        %v566 = vpack.c.b16 %v550, %v550
        %v567 = vpack.c.b16 %v551, %v551
        %v568 = vpack.c.b16 %v552, %v552
        %v569 = vpack.c.b16 %v553, %v553
        %v570 = vpack.c.b16 %v554, %v554
        %v571 = vpack.c.b16 %v555, %v555
        %v572 = vpack.c.b16 %v556, %v556
        %v573 = vpack.c.b16 %v557, %v557
        %v574 = vpack.c.b16 %v558, %v558
        %591 = vst [vmem:[%s276] sm:$0xf] %v559
        %592 = vst [vmem:[%s276 + $0x4] sm:$0xf] %v560
        %593 = vst [vmem:[%s276 + $0x8] sm:$0xf] %v561
        %594 = vst [vmem:[%s276 + $0xc] sm:$0xf] %v562
        %595 = vst [vmem:[%s276 + $0x10] sm:$0xf] %v563
        %596 = vst [vmem:[%s276 + $0x14] sm:$0xf] %v564
        %597 = vst [vmem:[%s276 + $0x18] sm:$0xf] %v565
        %598 = vst [vmem:[%s276 + $0x1c] sm:$0xf] %v566
        %599 = vst [vmem:[%s276 + $0x20] sm:$0xf] %v567
        %600 = vst [vmem:[%s276 + $0x24] sm:$0xf] %v568
        %601 = vst [vmem:[%s276 + $0x28] sm:$0xf] %v569
        %602 = vst [vmem:[%s276 + $0x2c] sm:$0xf] %v570
        %603 = vst [vmem:[%s276 + $0x30] sm:$0xf] %v571
        %604 = vst [vmem:[%s276 + $0x34] sm:$0xf] %v572
        %605 = vst [vmem:[%s276 + $0x38] sm:$0xf] %v573
        %606 = vst [vmem:[%s276 + $0x3c] sm:$0xf] %v574
        %s607 = sand.u32 %s157, 1
        %s608 = scalar_lea.sflag [#allocation4], %s607
        %s609 = sand.u32 %s157, 1
        %s610 = smul.addr %s609, 64
        %s611 = scalar_lea.vmem [#allocation7], %s610
        // Predicated region
        $region49: #{tpu_custom_call.1} parent=39 // pred_check
          %p612 = pneg %p167
        $region50: #{tpu_custom_call.1} parent=39 // pred_check_branch
          %614 = sbr.rel (%p612) target = $region52
        $region51: #{tpu_custom_call.1} parent=39 // pred_region
          %s615 = smul.u32 8, %s28
          %s617 = ssub.s32 1024, 1024
          %618 = vsyncadd %s608, %s617
          %s619 = smul.addr %s615, 2
          %s620 = smul.addr %s27, 32
          %s621 = sadd.s32 %s619, %s620
          %s622 = smul.addr %s621, 64
          %s623 = scalar_lea.hbm %s5, %s622
          %s624 = sshll.u32 %s611, 4
          %s625 = int_to_ptr.vmem [resolvable:$true] %s624
          %630 = dma.vmem_to_hbm [thread:$0]  %s625, 1024, %s623, %s608, 64, 64, 4
        $region52: #{tpu_custom_call.1} parent=39 // pred_fallthru
          _
      $region40: #{tpu_custom_call.1} parent=5 // pred_fallthru
        _
      %p631 = scmp.le.s32.totalorder 2, %s18
      // Predicated region
      $region53: #{tpu_custom_call.1} parent=5 // pred_check
        %p632 = pneg %p631
      $region54: #{tpu_custom_call.1} parent=5 // pred_check_branch
        %634 = sbr.rel (%p632) target = $region56
      $region55: #{tpu_custom_call.1} parent=5 // pred_region
        %s635 = ssub.s32 %s18, 2
        // Predicated region
        $region57: #{tpu_custom_call.1} parent=55 // pred_check
          %p636 = pneg %p173
        $region58: #{tpu_custom_call.1} parent=55 // pred_check_branch
          %638 = sbr.rel (%p636) target = $region60
        $region59: #{tpu_custom_call.1} parent=55 // pred_region
          %s639 = sand.u32 %s158, 1
          %s640 = scalar_lea.sflag [#allocation4], %s639
          %s641 = sand.u32 %s158, 1
          %s642 = smul.addr %s641, 64
          %s643 = scalar_lea.vmem [#allocation7], %s642
          %644 = dma.done %s640, 1024
        $region60: #{tpu_custom_call.1} parent=55 // pred_fallthru
          _
      $region56: #{tpu_custom_call.1} parent=5 // pred_fallthru
        _
    $region6: #{tpu_custom_call.1} parent=1 // loop_footer
      %s22 = sadd.s32 1, %s18
    $region7: #{tpu_custom_call.1} parent=1 // loop_footer_branch
      %17 = sbr.rel target = $region3
    $region8: #{tpu_custom_call.1} parent=1 // loop_exit
      _
    %645 = vsyncpa [#allocation3], 1
    %s646 = scalar_lea.sflag [#allocation3], 1
    %647 = vsyncpa %s646, 1
    %648 = vsyncpa [#allocation6], 1
    %649 = vsyncpa [#allocation4], 1
    %s650 = scalar_lea.sflag [#allocation4], 1
    %651 = vsyncpa %s650, 1

</llo_original>
